<compile_context>
chip_gen: v5e
topology: v5e:2x2
jax: 0.10.0
libtpu: 0.0.40
codegen_flags: <defaults>
</compile_context>

<pallas_src>
import functools

import jax
import jax.numpy as jnp
from jax import lax
from jax.experimental import pallas as pl
from jax.experimental.pallas import tpu as pltpu


_TN_MAX = 2048     # max reduction-chunk width (lanes), multiple of 128
_TM_MAX = 2048     # cap rows per block


def _round_up(x, m):
    return ((x + m - 1) // m) * m


def _vmem_budget():
    """(target_block_bytes, vmem_limit_bytes), generation-aware."""
    cap = 64 << 20
    try:
        cap = int(getattr(pltpu.get_tpu_info(), "vmem_capacity_bytes", cap))
    except Exception:
        pass
    if cap >= (100 << 20):          # v5e / v6e: 128 MiB physical VMEM
        return 6 << 20, 64 << 20
    return 3 << 20, 48 << 20        # v7x (64 MiB) or unknown


# ----------------------------------------------------------------------------
# 2-D kernel: reduce the last (lane) axis.  Outputs per-row mean and M2 (f32),
# both output-resident accumulators across the reduction-chunk grid axis.
# ----------------------------------------------------------------------------
def _var2d_kernel(x_ref, mean_ref, m2_ref, *, tn_blk, last_valid):
    k = pl.program_id(1)
    nk = pl.num_programs(1)

    x = x_ref[...].astype(jnp.float32)            # (tm, tn_blk)

    @pl.when(k == 0)
    def _():
        # Shift seed with column 0 (always valid); count is still 0 -> exact.
        mean_ref[...] = x[:, 0:1]
        m2_ref[...] = jnp.zeros_like(m2_ref)

    mean_old = mean_ref[...]                      # (tm, 1)
    col0 = (k * tn_blk).astype(jnp.float32)
    s = x - mean_old

    def update(s_eff, n_valid):
        cnt_new = col0 + float(n_valid)           # elements seen so far (>= 1)
        sum_s = jnp.sum(s_eff, axis=-1, keepdims=True)
        ssq_s = jnp.sum(s_eff * s_eff, axis=-1, keepdims=True)
        mean_ref[...] = mean_old + sum_s / cnt_new
        m2_ref[...] = m2_ref[...] + ssq_s - (sum_s * sum_s) / cnt_new

    if last_valid == tn_blk:
        update(s, tn_blk)                         # never ragged: no mask at all
    else:
        @pl.when(k != nk - 1)
        def _():
            update(s, tn_blk)                     # fast path: no mask

        @pl.when(k == nk - 1)
        def _():
            lane = lax.broadcasted_iota(jnp.int32, s.shape, 1)
            update(jnp.where(lane < last_valid, s, 0.0), last_valid)


def _var2d_partials(x2d):
    """Per-row (mean, M2) (both f32, shape (m, 1)) along the last axis."""
    m, n = x2d.shape
    itemsize = jnp.dtype(x2d.dtype).itemsize
    target_bytes, vmem_limit = _vmem_budget()

    tn = min(_round_up(n, 128), _TN_MAX)          # lane-packed chunk width
    tm = target_bytes // max(1, tn * itemsize)
    tm = max(8, (tm // 8) * 8)
    tm = min(tm, _TM_MAX, _round_up(m, 8))

    grid_m = pl.cdiv(m, tm)
    grid_k = pl.cdiv(n, tn)
    last_valid = n - (grid_k - 1) * tn            # static; in (0, tn]

    kernel = functools.partial(_var2d_kernel, tn_blk=tn, last_valid=last_valid)

    mean, m2 = pl.pallas_call(
        kernel,
        out_shape=(jax.ShapeDtypeStruct((m, 1), jnp.float32),
                   jax.ShapeDtypeStruct((m, 1), jnp.float32)),
        grid_spec=pltpu.PrefetchScalarGridSpec(
            num_scalar_prefetch=0,
            grid=(grid_m, grid_k),                # reduction axis last
            in_specs=[pl.BlockSpec((tm, tn), lambda i, k: (i, k))],
            out_specs=[pl.BlockSpec((tm, 1), lambda i, k: (i, 0)),
                       pl.BlockSpec((tm, 1), lambda i, k: (i, 0))],
        ),
        compiler_params=pltpu.CompilerParams(
            dimension_semantics=("parallel", "arbitrary"),
            vmem_limit_bytes=vmem_limit,
        ),
    )(x2d)
    return mean, m2


# ----------------------------------------------------------------------------
# 3-D kernel: reduce the middle (sublane) axis of (B, N, D); lanes carry the
# kept minor axis D -> no transpose pass, lane-dense accumulators/outputs.
# ----------------------------------------------------------------------------
def _var3d_kernel(x_ref, mean_ref, m2_ref, *, tn_blk, last_valid):
    ik = pl.program_id(2)
    nk = pl.num_programs(2)

    x = x_ref[...].astype(jnp.float32)            # (tb, tn_blk, td)

    @pl.when(ik == 0)
    def _():
        mean_ref[...] = x[:, 0:1, :]              # row 0 along N is always valid
        m2_ref[...] = jnp.zeros_like(m2_ref)

    mean_old = mean_ref[...]                      # (tb, 1, td)
    row0 = (ik * tn_blk).astype(jnp.float32)
    s = x - mean_old

    def update(s_eff, n_valid):
        cnt_new = row0 + float(n_valid)
        sum_s = jnp.sum(s_eff, axis=1, keepdims=True)
        ssq_s = jnp.sum(s_eff * s_eff, axis=1, keepdims=True)
        mean_ref[...] = mean_old + sum_s / cnt_new
        m2_ref[...] = m2_ref[...] + ssq_s - (sum_s * sum_s) / cnt_new

    if last_valid == tn_blk:
        update(s, tn_blk)
    else:
        @pl.when(ik != nk - 1)
        def _():
            update(s, tn_blk)

        @pl.when(ik == nk - 1)
        def _():
            sub = lax.broadcasted_iota(jnp.int32, s.shape, 1)
            update(jnp.where(sub < last_valid, s, 0.0), last_valid)


def _var3d_partials(x3d):
    """Per-(b,d) (mean, M2) (f32, shape (B, 1, D)) reducing the middle axis."""
    B, N, D = x3d.shape
    itemsize = jnp.dtype(x3d.dtype).itemsize
    target_bytes, vmem_limit = _vmem_budget()

    td = min(D, 1024) if (D % 128 == 0) else D    # lanes (must tile by 128 or == D)
    tn_budget = max(8, ((target_bytes // max(1, td * itemsize)) // 8) * 8)
    tn = max(8, min(_round_up(N, 8), tn_budget, 1024))
    tb = max(1, target_bytes // max(1, tn * td * itemsize))
    tb = min(tb, B)

    grid = (pl.cdiv(B, tb), pl.cdiv(D, td), pl.cdiv(N, tn))
    last_valid = N - (grid[2] - 1) * tn

    kernel = functools.partial(_var3d_kernel, tn_blk=tn, last_valid=last_valid)

    mean, m2 = pl.pallas_call(
        kernel,
        out_shape=(jax.ShapeDtypeStruct((B, 1, D), jnp.float32),
                   jax.ShapeDtypeStruct((B, 1, D), jnp.float32)),
        grid_spec=pltpu.PrefetchScalarGridSpec(
            num_scalar_prefetch=0,
            grid=grid,                            # reduction axis last
            in_specs=[pl.BlockSpec((tb, tn, td), lambda ib, id_, ik: (ib, ik, id_))],
            out_specs=[pl.BlockSpec((tb, 1, td), lambda ib, id_, ik: (ib, 0, id_)),
                       pl.BlockSpec((tb, 1, td), lambda ib, id_, ik: (ib, 0, id_))],
        ),
        compiler_params=pltpu.CompilerParams(
            dimension_semantics=("parallel", "parallel", "arbitrary"),
            vmem_limit_bytes=vmem_limit,
        ),
    )(x3d)
    return mean, m2


# ----------------------------------------------------------------------------
# Wrapper
# ----------------------------------------------------------------------------
def var(x, dim=None, correction=1):
    """JAX/Pallas equivalent of trident's Var forward (== torch.var)."""
    x = jnp.asarray(x)

    if dim is None:
        flat = x.reshape(-1)
        n_total = int(flat.shape[0])
        denom = n_total - correction
        if n_total <= _TN_MAX:
            # Tiny input: single-row, single-chunk kernel call.
            _, m2 = _var2d_partials(flat.reshape(1, -1))
            return (m2[0, 0] / denom).astype(x.dtype)
        # Reshape to (R, C) rows (C multiple of 128) -> row-blocked kernel,
        # then Chan-merge the R per-row partials (+ remainder) in plain JAX.
        c = min(_TN_MAX, max(128, ((n_total // 8) // 128) * 128))
        r = n_total // c
        rem = n_total - r * c
        mean_r, m2_r = _var2d_partials(flat[: r * c].reshape(r, c))
        means = mean_r[:, 0]
        m2s = m2_r[:, 0]
        counts = jnp.full((r,), float(c), jnp.float32)
        if rem:
            tail = flat[r * c:].astype(jnp.float32)
            mt = jnp.mean(tail)
            m2t = jnp.sum((tail - mt) ** 2)
            means = jnp.concatenate([means, mt[None]])
            m2s = jnp.concatenate([m2s, m2t[None]])
            counts = jnp.concatenate([counts, jnp.asarray([float(rem)], jnp.float32)])
        mu = jnp.sum(counts * means) / float(n_total)
        m2_tot = jnp.sum(m2s) + jnp.sum(counts * (means - mu) ** 2)
        return (m2_tot / denom).astype(x.dtype)

    # Reduction over explicit dims.
    dims = dim if isinstance(dim, (tuple, list)) else (dim,)
    red = sorted(set(d % x.ndim for d in dims))
    keep = [d for d in range(x.ndim) if d not in red]
    out_shape = tuple(int(x.shape[d]) for d in keep)
    n_red = 1
    for d in red:
        n_red *= int(x.shape[d])
    denom = n_red - correction

    # Case A: trailing reduction axes -> pure reshape, 2-D (lane) kernel.
    if red == list(range(x.ndim - len(red), x.ndim)):
        m = 1
        for s in out_shape:
            m *= s
        _, m2 = _var2d_partials(x.reshape(m, n_red))
        return (m2[:, 0] / denom).astype(x.dtype).reshape(out_shape)

    # Case B: contiguous block of reduction axes (leading or middle) ->
    # 3-D kernel, no transpose.
    if red == list(range(red[0], red[0] + len(red))):
        a, b = red[0], red[-1] + 1
        lead = 1
        for s in x.shape[:a]:
            lead *= int(s)
        minor = 1
        for s in x.shape[b:]:
            minor *= int(s)
        if minor == 1:  # degenerate minor axis -> effectively trailing
            _, m2 = _var2d_partials(x.reshape(lead, n_red))
            return (m2[:, 0] / denom).astype(x.dtype).reshape(out_shape)
        _, m2 = _var3d_partials(x.reshape(lead, n_red, minor))
        return (m2[:, 0, :] / denom).astype(x.dtype).reshape(out_shape)

    # Case C: scattered reduction axes -> transpose fallback (extra HBM pass).
    xt = jnp.transpose(x, keep + red)
    m = 1
    for s in out_shape:
        m *= s
    _, m2 = _var2d_partials(xt.reshape(m, n_red))
    return (m2[:, 0] / denom).astype(x.dtype).reshape(out_shape)


class Var:
    """Drop-in style wrapper mirroring trident.Var."""

    def __init__(self, dim=None, correction=1):
        self.dim = dim
        self.correction = correction

    def __call__(self, x):
        return var(x, self.dim, self.correction)

    def extra_repr(self):
        return f"dim={self.dim}, correction={self.correction}, backend=Pallas"


if __name__ == "__main__":
    key = jax.random.PRNGKey(0)
    k1, k2, k3 = jax.random.split(key, 3)

    # Case 1: 3-D input, reduce the MIDDLE axis -> native 3-D kernel, no transpose.
    x1 = jax.random.normal(k1, (4, 96, 32), dtype=jnp.float32) * 3.0 + 5.0
    out1 = jax.block_until_ready(Var(dim=1, correction=1)(x1))
    ref1 = jnp.var(x1, axis=1, ddof=1)
    assert out1.shape == ref1.shape
    assert jnp.allclose(out1, ref1, rtol=1e-4, atol=1e-5), (out1, ref1)

    # Case 2: trailing reduction with a ragged tail (n=3000 > 2048-wide chunks)
    # -> multi-chunk accumulator, mask only on the last chunk.
    x2 = jax.random.normal(k2, (6, 3000), dtype=jnp.float32) * 0.5 + 10.0
    out2 = jax.block_until_ready(var(x2, dim=1, correction=1))
    ref2 = jnp.var(x2, axis=1, ddof=1)
    assert jnp.allclose(out2, ref2, rtol=1e-4, atol=1e-5), (out2, ref2)

    # Case 3: dim=None full reduction -> (R, C) row-blocked kernel + Chan merge.
    x3 = jax.random.normal(key, (3, 5, 7, 41), dtype=jnp.float32)
    out3 = jax.block_until_ready(var(x3, dim=None, correction=1))
    ref3 = jnp.var(x3, ddof=1)
    assert out3.shape == ref3.shape
    assert jnp.allclose(out3, ref3, rtol=1e-4, atol=1e-5), (out3, ref3)

    # Case 4: scattered reduction axes -> transpose fallback path.
    x4 = jax.random.normal(k3, (4, 96, 32), dtype=jnp.float32) * 2.0 - 3.0
    out4 = jax.block_until_ready(var(x4, dim=(0, 2), correction=1))
    ref4 = jnp.var(x4, axis=(0, 2), ddof=1)
    assert out4.shape == ref4.shape
    assert jnp.allclose(out4, ref4, rtol=1e-4, atol=1e-5), (out4, ref4)

    print("KERNEL_OK")
</pallas_src>

<mosaic_0001>
module attributes {stable_mosaic.version = 11 : i64} {
  func.func @_var3d_kernel(%arg0: i32, %arg1: i32, %arg2: i32, %arg3: memref<4x96x32xf32, #tpu.memory_space<vmem>>, %arg4: memref<4x1x32xf32, #tpu.memory_space<vmem>>, %arg5: memref<4x1x32xf32, #tpu.memory_space<vmem>>) attributes {dimension_semantics = [#tpu.dimension_semantics<parallel>, #tpu.dimension_semantics<parallel>, #tpu.dimension_semantics<arbitrary>], iteration_bounds = array<i64: 1, 1, 1>, scalar_prefetch = 0 : i64, scratch_operands = 0 : i64, tpu.core_type = #tpu.core_type<tc>, window_params = [{transform_indices = @transform_0, window_bounds = array<i64: 4, 96, 32>}, {transform_indices = @transform_1, window_bounds = array<i64: 4, 1, 32>}, {transform_indices = @transform_2, window_bounds = array<i64: 4, 1, 32>}]} {
    %c0 = arith.constant 0 : index
    %c0_0 = arith.constant 0 : index
    %c0_1 = arith.constant 0 : index
    %0 = vector.load %arg3[%c0, %c0_0, %c0_1] : memref<4x96x32xf32, #tpu.memory_space<vmem>>, vector<4x96x32xf32>
    %c0_i32 = arith.constant 0 : i32
    %1 = arith.cmpi eq, %arg2, %c0_i32 : i32
    %2 = arith.extui %1 : i1 to i32
    %c0_i32_2 = arith.constant 0 : i32
    %3 = arith.cmpi ne, %2, %c0_i32_2 : i32
    scf.if %3 {
      %26 = vector.extract_strided_slice %0 {offsets = [0, 0, 0], sizes = [4, 1, 32], strides = [1, 1, 1]} : vector<4x96x32xf32> to vector<4x1x32xf32>
      %c0_17 = arith.constant 0 : index
      %c0_18 = arith.constant 0 : index
      %c0_19 = arith.constant 0 : index
      %27 = vector.load %arg4[%c0_17, %c0_18, %c0_19] : memref<4x1x32xf32, #tpu.memory_space<vmem>>, vector<4x1x32xf32>
      tpu.vector_store %arg4[%c0_17, %c0_18, %c0_19], %26 {strides = array<i32>} : memref<4x1x32xf32, #tpu.memory_space<vmem>>, vector<4x1x32xf32>,
      %cst_20 = arith.constant 0.000000e+00 : f32
      %28 = vector.broadcast %cst_20 : f32 to vector<4x1x32xf32>
      %c0_21 = arith.constant 0 : index
      %c0_22 = arith.constant 0 : index
      %c0_23 = arith.constant 0 : index
      %29 = vector.load %arg5[%c0_21, %c0_22, %c0_23] : memref<4x1x32xf32, #tpu.memory_space<vmem>>, vector<4x1x32xf32>
      tpu.vector_store %arg5[%c0_21, %c0_22, %c0_23], %28 {strides = array<i32>} : memref<4x1x32xf32, #tpu.memory_space<vmem>>, vector<4x1x32xf32>,
    } else {
    }
    %c0_3 = arith.constant 0 : index
    %c0_4 = arith.constant 0 : index
    %c0_5 = arith.constant 0 : index
    %4 = vector.load %arg4[%c0_3, %c0_4, %c0_5] : memref<4x1x32xf32, #tpu.memory_space<vmem>>, vector<4x1x32xf32>
    %c96_i32 = arith.constant 96 : i32
    %5 = arith.muli %arg2, %c96_i32 : i32
    %6 = arith.sitofp %5 : i32 to f32
    %7 = vector.broadcast %4 : vector<4x1x32xf32> to vector<4x96x32xf32>
    %8 = arith.subf %0, %7 : vector<4x96x32xf32>
    %cst = arith.constant 9.600000e+01 : f32
    %9 = arith.addf %6, %cst : f32
    %cst_6 = arith.constant dense<0.000000e+00> : vector<4x32xf32>
    %10 = vector.multi_reduction <add>, %8, %cst_6 [1] : vector<4x96x32xf32> to vector<4x32xf32>
    %11 = vector.shape_cast %10 : vector<4x32xf32> to vector<4x1x32xf32>
    %12 = arith.mulf %8, %8 : vector<4x96x32xf32>
    %cst_7 = arith.constant dense<0.000000e+00> : vector<4x32xf32>
    %13 = vector.multi_reduction <add>, %12, %cst_7 [1] : vector<4x96x32xf32> to vector<4x32xf32>
    %14 = vector.shape_cast %13 : vector<4x32xf32> to vector<4x1x32xf32>
    %15 = vector.broadcast %9 : f32 to vector<4x1x32xf32>
    %16 = arith.divf %11, %15 : vector<4x1x32xf32>
    %17 = arith.addf %4, %16 : vector<4x1x32xf32>
    %c0_8 = arith.constant 0 : index
    %c0_9 = arith.constant 0 : index
    %c0_10 = arith.constant 0 : index
    %18 = vector.load %arg4[%c0_8, %c0_9, %c0_10] : memref<4x1x32xf32, #tpu.memory_space<vmem>>, vector<4x1x32xf32>
    tpu.vector_store %arg4[%c0_8, %c0_9, %c0_10], %17 {strides = array<i32>} : memref<4x1x32xf32, #tpu.memory_space<vmem>>, vector<4x1x32xf32>,
    %c0_11 = arith.constant 0 : index
    %c0_12 = arith.constant 0 : index
    %c0_13 = arith.constant 0 : index
    %19 = vector.load %arg5[%c0_11, %c0_12, %c0_13] : memref<4x1x32xf32, #tpu.memory_space<vmem>>, vector<4x1x32xf32>
    %20 = arith.addf %19, %14 : vector<4x1x32xf32>
    %21 = arith.mulf %11, %11 : vector<4x1x32xf32>
    %22 = vector.broadcast %9 : f32 to vector<4x1x32xf32>
    %23 = arith.divf %21, %22 : vector<4x1x32xf32>
    %24 = arith.subf %20, %23 : vector<4x1x32xf32>
    %c0_14 = arith.constant 0 : index
    %c0_15 = arith.constant 0 : index
    %c0_16 = arith.constant 0 : index
    %25 = vector.load %arg5[%c0_14, %c0_15, %c0_16] : memref<4x1x32xf32, #tpu.memory_space<vmem>>, vector<4x1x32xf32>
    tpu.vector_store %arg5[%c0_14, %c0_15, %c0_16], %24 {strides = array<i32>} : memref<4x1x32xf32, #tpu.memory_space<vmem>>, vector<4x1x32xf32>,
    return
  }
  func.func @transform_0(%arg0: i32, %arg1: i32, %arg2: i32) -> (i32, i32, i32) {
    %c0_i32 = arith.constant 0 : i32
    return %arg0, %arg2, %arg1 : i32, i32, i32
  }
  func.func @transform_1(%arg0: i32, %arg1: i32, %arg2: i32) -> (i32, i32, i32) {
    %c0_i32 = arith.constant 0 : i32
    %c0_i32_0 = arith.constant 0 : i32
    return %arg0, %c0_i32, %arg1 : i32, i32, i32
  }
  func.func @transform_2(%arg0: i32, %arg1: i32, %arg2: i32) -> (i32, i32, i32) {
    %c0_i32 = arith.constant 0 : i32
    %c0_i32_0 = arith.constant 0 : i32
    return %arg0, %c0_i32, %arg1 : i32, i32, i32
  }
}

</mosaic_0001>

<llo_original>
// kernel: tpu_custom_call.1
$region0: #{tpu_custom_call.1}
  #allocation0 [shape = 'u32[]', space=smem, size = 0x4, offset = 0x4, fixed_abs, tag = 'smem constant byte address 0x4 - core index']
  #allocation1 [shape = 'u32[72,128]{1,0:T(1,128)}', space=vmem, size = 0x9000, scoped, tag = 'internal scratch']
  %s0 = inlined_call_operand.vmem [shape: f32[4,96,32], index: 0, kind: input, shape index: {}]
  %s1 = inlined_call_operand.hbm [shape: f32[4,1,32], index: 1, kind: output, shape index: {0}]
  %s2 = inlined_call_operand.hbm [shape: f32[4,1,32], index: 2, kind: output, shape index: {1}]
  %3 = xla_tuple %s1, %s2
  %s4 = sld [smem:[#allocation0]]
  $region26: #{tpu_custom_call.1} parent=0
    _
  %s6 = ssub.s32 1, %s4
  %s7 = scalar_select 0, %s6, %s4
  $region1: #{tpu_custom_call.1} parent=0
    #allocation2 [shape = 'u8[2048]{0}', space=vmem, size = 0x800, scoped, tag = 'output window, operand 0, single buffered']
    #allocation3 [shape = 's32[1]{0}', space=sflag, size = 0x4, scoped, tag = 'scoped memory for tpu_custom_call.1']
    #allocation4 [shape = 'u8[2048]{0}', space=vmem, size = 0x800, scoped, tag = 'output window, operand 1, single buffered']
    #allocation5 [shape = 's32[1]{0}', space=sflag, size = 0x4, scoped, tag = 'scoped memory for tpu_custom_call.1']
    %8 = vsyncpa [#allocation3], 0
    %9 = vsyncpa [#allocation5], 0
    // Predicated region
    $region2: #{tpu_custom_call.1} parent=1 // pred_check
      _
    $region3: #{tpu_custom_call.1} parent=1 // pred_check_branch
      %11 = sbr.rel (0) target = $region5
    $region4: #{tpu_custom_call.1} parent=1 // pred_region
      _
    $region5: #{tpu_custom_call.1} parent=1 // pred_fallthru
      _
    %v12 = vld [vmem:[%s0] sm:$0xff]
    %v13 = vld [vmem:[%s0 + $0x8] sm:$0xff]
    %v14 = vld [vmem:[%s0 + $0x10] sm:$0xff]
    %v15 = vld [vmem:[%s0 + $0x18] sm:$0xff]
    %v16 = vld [vmem:[%s0 + $0x20] sm:$0xff]
    %v17 = vld [vmem:[%s0 + $0x28] sm:$0xff]
    %v18 = vld [vmem:[%s0 + $0x30] sm:$0xff]
    %v19 = vld [vmem:[%s0 + $0x38] sm:$0xff]
    %v20 = vld [vmem:[%s0 + $0x40] sm:$0xff]
    %v21 = vld [vmem:[%s0 + $0x48] sm:$0xff]
    %v22 = vld [vmem:[%s0 + $0x50] sm:$0xff]
    %v23 = vld [vmem:[%s0 + $0x58] sm:$0xff]
    %v24 = vld [vmem:[%s0 + $0x60] sm:$0xff]
    %v25 = vld [vmem:[%s0 + $0x68] sm:$0xff]
    %v26 = vld [vmem:[%s0 + $0x70] sm:$0xff]
    %v27 = vld [vmem:[%s0 + $0x78] sm:$0xff]
    %v28 = vld [vmem:[%s0 + $0x80] sm:$0xff]
    %v29 = vld [vmem:[%s0 + $0x88] sm:$0xff]
    %v30 = vld [vmem:[%s0 + $0x90] sm:$0xff]
    %v31 = vld [vmem:[%s0 + $0x98] sm:$0xff]
    %v32 = vld [vmem:[%s0 + $0xa0] sm:$0xff]
    %v33 = vld [vmem:[%s0 + $0xa8] sm:$0xff]
    %v34 = vld [vmem:[%s0 + $0xb0] sm:$0xff]
    %v35 = vld [vmem:[%s0 + $0xb8] sm:$0xff]
    %v36 = vld [vmem:[%s0 + $0xc0] sm:$0xff]
    %v37 = vld [vmem:[%s0 + $0xc8] sm:$0xff]
    %v38 = vld [vmem:[%s0 + $0xd0] sm:$0xff]
    %v39 = vld [vmem:[%s0 + $0xd8] sm:$0xff]
    %v40 = vld [vmem:[%s0 + $0xe0] sm:$0xff]
    %v41 = vld [vmem:[%s0 + $0xe8] sm:$0xff]
    %v42 = vld [vmem:[%s0 + $0xf0] sm:$0xff]
    %v43 = vld [vmem:[%s0 + $0xf8] sm:$0xff]
    %v44 = vld [vmem:[%s0 + $0x100] sm:$0xff]
    %v45 = vld [vmem:[%s0 + $0x108] sm:$0xff]
    %v46 = vld [vmem:[%s0 + $0x110] sm:$0xff]
    %v47 = vld [vmem:[%s0 + $0x118] sm:$0xff]
    %v48 = vld [vmem:[%s0 + $0x120] sm:$0xff]
    %v49 = vld [vmem:[%s0 + $0x128] sm:$0xff]
    %v50 = vld [vmem:[%s0 + $0x130] sm:$0xff]
    %v51 = vld [vmem:[%s0 + $0x138] sm:$0xff]
    %v52 = vld [vmem:[%s0 + $0x140] sm:$0xff]
    %v53 = vld [vmem:[%s0 + $0x148] sm:$0xff]
    %v54 = vld [vmem:[%s0 + $0x150] sm:$0xff]
    %v55 = vld [vmem:[%s0 + $0x158] sm:$0xff]
    %v56 = vld [vmem:[%s0 + $0x160] sm:$0xff]
    %v57 = vld [vmem:[%s0 + $0x168] sm:$0xff]
    %v58 = vld [vmem:[%s0 + $0x170] sm:$0xff]
    %v59 = vld [vmem:[%s0 + $0x178] sm:$0xff]
    %p60 = scmp.eq.s32.totalorder 0, 0
    // Predicated region
    $region6: #{tpu_custom_call.1} parent=1 // pred_check
      %p61 = pneg %p60
    $region7: #{tpu_custom_call.1} parent=1 // pred_check_branch
      %63 = sbr.rel (%p61) target = $region9
    $region8: #{tpu_custom_call.1} parent=1 // pred_region
      %vm64 = vcmask 253952
      %65 = vst.msk [vmem:[#allocation2] sm:$0x1] %vm64, %v12
      %66 = vst.msk [vmem:[#allocation2 + $0x1] sm:$0x1] %vm64, %v24
      %67 = vst.msk [vmem:[#allocation2 + $0x2] sm:$0x1] %vm64, %v36
      %68 = vst.msk [vmem:[#allocation2 + $0x3] sm:$0x1] %vm64, %v48
      %69 = vst.msk [vmem:[#allocation4] sm:$0x1] %vm64, 0.0
      %70 = vst.msk [vmem:[#allocation4 + $0x1] sm:$0x1] %vm64, 0.0
      %71 = vst.msk [vmem:[#allocation4 + $0x2] sm:$0x1] %vm64, 0.0
      %72 = vst.msk [vmem:[#allocation4 + $0x3] sm:$0x1] %vm64, 0.0
    $region9: #{tpu_custom_call.1} parent=1 // pred_fallthru
      _
    %v73 = vld [vmem:[#allocation2] sm:$0x1]
    %v74 = vld [vmem:[#allocation2 + $0x1] sm:$0x1]
    %v75 = vld [vmem:[#allocation2 + $0x2] sm:$0x1]
    %v76 = vld [vmem:[#allocation2 + $0x3] sm:$0x1]
    %s77 = smul.u32 0, 96
    %s78 = scvt.s32.f32 %s77
    %v83 = vperm.slane %v73, 0
    %v84 = vperm.slane %v74, 0
    %v85 = vperm.slane %v75, 0
    %v86 = vperm.slane %v76, 0
    %v91 = vsub.f32 %v12, %v83
    %v92 = vsub.f32 %v13, %v83
    %v93 = vsub.f32 %v14, %v83
    %v94 = vsub.f32 %v15, %v83
    %v95 = vsub.f32 %v16, %v83
    %v96 = vsub.f32 %v17, %v83
    %v97 = vsub.f32 %v18, %v83
    %v98 = vsub.f32 %v19, %v83
    %v99 = vsub.f32 %v20, %v83
    %v100 = vsub.f32 %v21, %v83
    %v101 = vsub.f32 %v22, %v83
    %v102 = vsub.f32 %v23, %v83
    %v103 = vsub.f32 %v24, %v84
    %v104 = vsub.f32 %v25, %v84
    %v105 = vsub.f32 %v26, %v84
    %v106 = vsub.f32 %v27, %v84
    %v107 = vsub.f32 %v28, %v84
    %v108 = vsub.f32 %v29, %v84
    %v109 = vsub.f32 %v30, %v84
    %v110 = vsub.f32 %v31, %v84
    %v111 = vsub.f32 %v32, %v84
    %v112 = vsub.f32 %v33, %v84
    %v113 = vsub.f32 %v34, %v84
    %v114 = vsub.f32 %v35, %v84
    %v115 = vsub.f32 %v36, %v85
    %v116 = vsub.f32 %v37, %v85
    %v117 = vsub.f32 %v38, %v85
    %v118 = vsub.f32 %v39, %v85
    %v119 = vsub.f32 %v40, %v85
    %v120 = vsub.f32 %v41, %v85
    %v121 = vsub.f32 %v42, %v85
    %v122 = vsub.f32 %v43, %v85
    %v123 = vsub.f32 %v44, %v85
    %v124 = vsub.f32 %v45, %v85
    %v125 = vsub.f32 %v46, %v85
    %v126 = vsub.f32 %v47, %v85
    %v127 = vsub.f32 %v48, %v86
    %v128 = vsub.f32 %v49, %v86
    %v129 = vsub.f32 %v50, %v86
    %v130 = vsub.f32 %v51, %v86
    %v131 = vsub.f32 %v52, %v86
    %v132 = vsub.f32 %v53, %v86
    %v133 = vsub.f32 %v54, %v86
    %v134 = vsub.f32 %v55, %v86
    %v135 = vsub.f32 %v56, %v86
    %v136 = vsub.f32 %v57, %v86
    %v137 = vsub.f32 %v58, %v86
    %v138 = vsub.f32 %v59, %v86
    %s139 = sadd.f32 %s78, 96.0
    %vm140 = vcmask 261120
    %v141 = vsel %vm140, %v91, 0.0
    %v142 = vsel %vm140, %v92, 0.0
    %v143 = vadd.f32 %v141, %v142
    %v144 = vsel %vm140, %v93, 0.0
    %v145 = vadd.f32 %v143, %v144
    %v146 = vsel %vm140, %v94, 0.0
    %v147 = vadd.f32 %v145, %v146
    %v148 = vsel %vm140, %v95, 0.0
    %v149 = vadd.f32 %v147, %v148
    %v150 = vsel %vm140, %v96, 0.0
    %v151 = vadd.f32 %v149, %v150
    %v152 = vsel %vm140, %v97, 0.0
    %v153 = vadd.f32 %v151, %v152
    %v154 = vsel %vm140, %v98, 0.0
    %v155 = vadd.f32 %v153, %v154
    %v156 = vsel %vm140, %v99, 0.0
    %v157 = vadd.f32 %v155, %v156
    %v158 = vsel %vm140, %v100, 0.0
    %v159 = vadd.f32 %v157, %v158
    %v160 = vsel %vm140, %v101, 0.0
    %v161 = vadd.f32 %v159, %v160
    %v162 = vsel %vm140, %v102, 0.0
    %v163 = vadd.f32 %v161, %v162
    %v164 = vrot.slane %v163, 4
    %v165 = vadd.f32 %v163, %v164
    %v166 = vrot.slane %v165, 2
    %v167 = vadd.f32 %v165, %v166
    %v168 = vrot.slane %v167, 1
    %v169 = vadd.f32 %v167, %v168
    %v170 = vsel %vm140, %v103, 0.0
    %v171 = vsel %vm140, %v104, 0.0
    %v172 = vadd.f32 %v170, %v171
    %v173 = vsel %vm140, %v105, 0.0
    %v174 = vadd.f32 %v172, %v173
    %v175 = vsel %vm140, %v106, 0.0
    %v176 = vadd.f32 %v174, %v175
    %v177 = vsel %vm140, %v107, 0.0
    %v178 = vadd.f32 %v176, %v177
    %v179 = vsel %vm140, %v108, 0.0
    %v180 = vadd.f32 %v178, %v179
    %v181 = vsel %vm140, %v109, 0.0
    %v182 = vadd.f32 %v180, %v181
    %v183 = vsel %vm140, %v110, 0.0
    %v184 = vadd.f32 %v182, %v183
    %v185 = vsel %vm140, %v111, 0.0
    %v186 = vadd.f32 %v184, %v185
    %v187 = vsel %vm140, %v112, 0.0
    %v188 = vadd.f32 %v186, %v187
    %v189 = vsel %vm140, %v113, 0.0
    %v190 = vadd.f32 %v188, %v189
    %v191 = vsel %vm140, %v114, 0.0
    %v192 = vadd.f32 %v190, %v191
    %v193 = vrot.slane %v192, 4
    %v194 = vadd.f32 %v192, %v193
    %v195 = vrot.slane %v194, 2
    %v196 = vadd.f32 %v194, %v195
    %v197 = vrot.slane %v196, 1
    %v198 = vadd.f32 %v196, %v197
    %v199 = vsel %vm140, %v115, 0.0
    %v200 = vsel %vm140, %v116, 0.0
    %v201 = vadd.f32 %v199, %v200
    %v202 = vsel %vm140, %v117, 0.0
    %v203 = vadd.f32 %v201, %v202
    %v204 = vsel %vm140, %v118, 0.0
    %v205 = vadd.f32 %v203, %v204
    %v206 = vsel %vm140, %v119, 0.0
    %v207 = vadd.f32 %v205, %v206
    %v208 = vsel %vm140, %v120, 0.0
    %v209 = vadd.f32 %v207, %v208
    %v210 = vsel %vm140, %v121, 0.0
    %v211 = vadd.f32 %v209, %v210
    %v212 = vsel %vm140, %v122, 0.0
    %v213 = vadd.f32 %v211, %v212
    %v214 = vsel %vm140, %v123, 0.0
    %v215 = vadd.f32 %v213, %v214
    %v216 = vsel %vm140, %v124, 0.0
    %v217 = vadd.f32 %v215, %v216
    %v218 = vsel %vm140, %v125, 0.0
    %v219 = vadd.f32 %v217, %v218
    %v220 = vsel %vm140, %v126, 0.0
    %v221 = vadd.f32 %v219, %v220
    %v222 = vrot.slane %v221, 4
    %v223 = vadd.f32 %v221, %v222
    %v224 = vrot.slane %v223, 2
    %v225 = vadd.f32 %v223, %v224
    %v226 = vrot.slane %v225, 1
    %v227 = vadd.f32 %v225, %v226
    %v228 = vsel %vm140, %v127, 0.0
    %v229 = vsel %vm140, %v128, 0.0
    %v230 = vadd.f32 %v228, %v229
    %v231 = vsel %vm140, %v129, 0.0
    %v232 = vadd.f32 %v230, %v231
    %v233 = vsel %vm140, %v130, 0.0
    %v234 = vadd.f32 %v232, %v233
    %v235 = vsel %vm140, %v131, 0.0
    %v236 = vadd.f32 %v234, %v235
    %v237 = vsel %vm140, %v132, 0.0
    %v238 = vadd.f32 %v236, %v237
    %v239 = vsel %vm140, %v133, 0.0
    %v240 = vadd.f32 %v238, %v239
    %v241 = vsel %vm140, %v134, 0.0
    %v242 = vadd.f32 %v240, %v241
    %v243 = vsel %vm140, %v135, 0.0
    %v244 = vadd.f32 %v242, %v243
    %v245 = vsel %vm140, %v136, 0.0
    %v246 = vadd.f32 %v244, %v245
    %v247 = vsel %vm140, %v137, 0.0
    %v248 = vadd.f32 %v246, %v247
    %v249 = vsel %vm140, %v138, 0.0
    %v250 = vadd.f32 %v248, %v249
    %v251 = vrot.slane %v250, 4
    %v252 = vadd.f32 %v250, %v251
    %v253 = vrot.slane %v252, 2
    %v254 = vadd.f32 %v252, %v253
    %v255 = vrot.slane %v254, 1
    %v256 = vadd.f32 %v254, %v255
    %v257 = vmul.f32 %v91, %v91
    %v258 = vmul.f32 %v92, %v92
    %v259 = vmul.f32 %v93, %v93
    %v260 = vmul.f32 %v94, %v94
    %v261 = vmul.f32 %v95, %v95
    %v262 = vmul.f32 %v96, %v96
    %v263 = vmul.f32 %v97, %v97
    %v264 = vmul.f32 %v98, %v98
    %v265 = vmul.f32 %v99, %v99
    %v266 = vmul.f32 %v100, %v100
    %v267 = vmul.f32 %v101, %v101
    %v268 = vmul.f32 %v102, %v102
    %v269 = vmul.f32 %v103, %v103
    %v270 = vmul.f32 %v104, %v104
    %v271 = vmul.f32 %v105, %v105
    %v272 = vmul.f32 %v106, %v106
    %v273 = vmul.f32 %v107, %v107
    %v274 = vmul.f32 %v108, %v108
    %v275 = vmul.f32 %v109, %v109
    %v276 = vmul.f32 %v110, %v110
    %v277 = vmul.f32 %v111, %v111
    %v278 = vmul.f32 %v112, %v112
    %v279 = vmul.f32 %v113, %v113
    %v280 = vmul.f32 %v114, %v114
    %v281 = vmul.f32 %v115, %v115
    %v282 = vmul.f32 %v116, %v116
    %v283 = vmul.f32 %v117, %v117
    %v284 = vmul.f32 %v118, %v118
    %v285 = vmul.f32 %v119, %v119
    %v286 = vmul.f32 %v120, %v120
    %v287 = vmul.f32 %v121, %v121
    %v288 = vmul.f32 %v122, %v122
    %v289 = vmul.f32 %v123, %v123
    %v290 = vmul.f32 %v124, %v124
    %v291 = vmul.f32 %v125, %v125
    %v292 = vmul.f32 %v126, %v126
    %v293 = vmul.f32 %v127, %v127
    %v294 = vmul.f32 %v128, %v128
    %v295 = vmul.f32 %v129, %v129
    %v296 = vmul.f32 %v130, %v130
    %v297 = vmul.f32 %v131, %v131
    %v298 = vmul.f32 %v132, %v132
    %v299 = vmul.f32 %v133, %v133
    %v300 = vmul.f32 %v134, %v134
    %v301 = vmul.f32 %v135, %v135
    %v302 = vmul.f32 %v136, %v136
    %v303 = vmul.f32 %v137, %v137
    %v304 = vmul.f32 %v138, %v138
    %v305 = vsel %vm140, %v257, 0.0
    %v306 = vsel %vm140, %v258, 0.0
    %v307 = vadd.f32 %v305, %v306
    %v308 = vsel %vm140, %v259, 0.0
    %v309 = vadd.f32 %v307, %v308
    %v310 = vsel %vm140, %v260, 0.0
    %v311 = vadd.f32 %v309, %v310
    %v312 = vsel %vm140, %v261, 0.0
    %v313 = vadd.f32 %v311, %v312
    %v314 = vsel %vm140, %v262, 0.0
    %v315 = vadd.f32 %v313, %v314
    %v316 = vsel %vm140, %v263, 0.0
    %v317 = vadd.f32 %v315, %v316
    %v318 = vsel %vm140, %v264, 0.0
    %v319 = vadd.f32 %v317, %v318
    %v320 = vsel %vm140, %v265, 0.0
    %v321 = vadd.f32 %v319, %v320
    %v322 = vsel %vm140, %v266, 0.0
    %v323 = vadd.f32 %v321, %v322
    %v324 = vsel %vm140, %v267, 0.0
    %v325 = vadd.f32 %v323, %v324
    %v326 = vsel %vm140, %v268, 0.0
    %v327 = vadd.f32 %v325, %v326
    %v328 = vrot.slane %v327, 4
    %v329 = vadd.f32 %v327, %v328
    %v330 = vrot.slane %v329, 2
    %v331 = vadd.f32 %v329, %v330
    %v332 = vrot.slane %v331, 1
    %v333 = vadd.f32 %v331, %v332
    %v334 = vsel %vm140, %v269, 0.0
    %v335 = vsel %vm140, %v270, 0.0
    %v336 = vadd.f32 %v334, %v335
    %v337 = vsel %vm140, %v271, 0.0
    %v338 = vadd.f32 %v336, %v337
    %v339 = vsel %vm140, %v272, 0.0
    %v340 = vadd.f32 %v338, %v339
    %v341 = vsel %vm140, %v273, 0.0
    %v342 = vadd.f32 %v340, %v341
    %v343 = vsel %vm140, %v274, 0.0
    %v344 = vadd.f32 %v342, %v343
    %v345 = vsel %vm140, %v275, 0.0
    %v346 = vadd.f32 %v344, %v345
    %v347 = vsel %vm140, %v276, 0.0
    %v348 = vadd.f32 %v346, %v347
    %v349 = vsel %vm140, %v277, 0.0
    %v350 = vadd.f32 %v348, %v349
    %v351 = vsel %vm140, %v278, 0.0
    %v352 = vadd.f32 %v350, %v351
    %v353 = vsel %vm140, %v279, 0.0
    %v354 = vadd.f32 %v352, %v353
    %v355 = vsel %vm140, %v280, 0.0
    %v356 = vadd.f32 %v354, %v355
    %v357 = vrot.slane %v356, 4
    %v358 = vadd.f32 %v356, %v357
    %v359 = vrot.slane %v358, 2
    %v360 = vadd.f32 %v358, %v359
    %v361 = vrot.slane %v360, 1
    %v362 = vadd.f32 %v360, %v361
    %v363 = vsel %vm140, %v281, 0.0
    %v364 = vsel %vm140, %v282, 0.0
    %v365 = vadd.f32 %v363, %v364
    %v366 = vsel %vm140, %v283, 0.0
    %v367 = vadd.f32 %v365, %v366
    %v368 = vsel %vm140, %v284, 0.0
    %v369 = vadd.f32 %v367, %v368
    %v370 = vsel %vm140, %v285, 0.0
    %v371 = vadd.f32 %v369, %v370
    %v372 = vsel %vm140, %v286, 0.0
    %v373 = vadd.f32 %v371, %v372
    %v374 = vsel %vm140, %v287, 0.0
    %v375 = vadd.f32 %v373, %v374
    %v376 = vsel %vm140, %v288, 0.0
    %v377 = vadd.f32 %v375, %v376
    %v378 = vsel %vm140, %v289, 0.0
    %v379 = vadd.f32 %v377, %v378
    %v380 = vsel %vm140, %v290, 0.0
    %v381 = vadd.f32 %v379, %v380
    %v382 = vsel %vm140, %v291, 0.0
    %v383 = vadd.f32 %v381, %v382
    %v384 = vsel %vm140, %v292, 0.0
    %v385 = vadd.f32 %v383, %v384
    %v386 = vrot.slane %v385, 4
    %v387 = vadd.f32 %v385, %v386
    %v388 = vrot.slane %v387, 2
    %v389 = vadd.f32 %v387, %v388
    %v390 = vrot.slane %v389, 1
    %v391 = vadd.f32 %v389, %v390
    %v392 = vsel %vm140, %v293, 0.0
    %v393 = vsel %vm140, %v294, 0.0
    %v394 = vadd.f32 %v392, %v393
    %v395 = vsel %vm140, %v295, 0.0
    %v396 = vadd.f32 %v394, %v395
    %v397 = vsel %vm140, %v296, 0.0
    %v398 = vadd.f32 %v396, %v397
    %v399 = vsel %vm140, %v297, 0.0
    %v400 = vadd.f32 %v398, %v399
    %v401 = vsel %vm140, %v298, 0.0
    %v402 = vadd.f32 %v400, %v401
    %v403 = vsel %vm140, %v299, 0.0
    %v404 = vadd.f32 %v402, %v403
    %v405 = vsel %vm140, %v300, 0.0
    %v406 = vadd.f32 %v404, %v405
    %v407 = vsel %vm140, %v301, 0.0
    %v408 = vadd.f32 %v406, %v407
    %v409 = vsel %vm140, %v302, 0.0
    %v410 = vadd.f32 %v408, %v409
    %v411 = vsel %vm140, %v303, 0.0
    %v412 = vadd.f32 %v410, %v411
    %v413 = vsel %vm140, %v304, 0.0
    %v414 = vadd.f32 %v412, %v413
    %v415 = vrot.slane %v414, 4
    %v416 = vadd.f32 %v414, %v415
    %v417 = vrot.slane %v416, 2
    %v418 = vadd.f32 %v416, %v417
    %v419 = vrot.slane %v418, 1
    %v420 = vadd.f32 %v418, %v419
    %v421 = vstv %s139
    %v422 = vrcp.pop %v421
    %v423 = vmul.f32 %v421, %v422
    %v424 = vsub.f32 1.0, %v423
    %v425 = vmul.f32 %v422, %v424
    %v426 = vadd.f32 %v422, %v425
    %vm427 = vweird.f32 %v421
    %vm428 = vweird.f32 %v422
    %vm429 = vmor %vm427, %vm428
    %v430 = vsel %vm429, %v422, %v426
    %v431 = vand.u32 2147483647, %v421
    %vm432 = vcmp.eq.f32.partialorder %v431, 8.507059e+37
    %v433 = vand.u32 %v421, 2147483648
    %v434 = vor.u32 1.1754944e-38, %v433
    %v435 = vsel %vm432, %v434, %v430
    %v436 = vmul.f32 %v169, %v435
    %v437 = vmul.f32 %v198, %v435
    %v438 = vmul.f32 %v227, %v435
    %v439 = vmul.f32 %v256, %v435
    %v440 = vadd.f32 %v73, %v436
    %v441 = vadd.f32 %v74, %v437
    %v442 = vadd.f32 %v75, %v438
    %v443 = vadd.f32 %v76, %v439
    %vm444 = vcmask 253952
    %445 = vst.msk [vmem:[#allocation2] sm:$0x1] %vm444, %v440
    %446 = vst.msk [vmem:[#allocation2 + $0x1] sm:$0x1] %vm444, %v441
    %447 = vst.msk [vmem:[#allocation2 + $0x2] sm:$0x1] %vm444, %v442
    %448 = vst.msk [vmem:[#allocation2 + $0x3] sm:$0x1] %vm444, %v443
    %v449 = vld [vmem:[#allocation4] sm:$0x1]
    %v450 = vld [vmem:[#allocation4 + $0x1] sm:$0x1]
    %v451 = vld [vmem:[#allocation4 + $0x2] sm:$0x1]
    %v452 = vld [vmem:[#allocation4 + $0x3] sm:$0x1]
    %v453 = vadd.f32 %v449, %v333
    %v454 = vadd.f32 %v450, %v362
    %v455 = vadd.f32 %v451, %v391
    %v456 = vadd.f32 %v452, %v420
    %v457 = vmul.f32 %v169, %v169
    %v458 = vmul.f32 %v198, %v198
    %v459 = vmul.f32 %v227, %v227
    %v460 = vmul.f32 %v256, %v256
    %v461 = vmul.f32 %v457, %v435
    %v462 = vmul.f32 %v458, %v435
    %v463 = vmul.f32 %v459, %v435
    %v464 = vmul.f32 %v460, %v435
    %v465 = vsub.f32 %v453, %v461
    %v466 = vsub.f32 %v454, %v462
    %v467 = vsub.f32 %v455, %v463
    %v468 = vsub.f32 %v456, %v464
    %469 = vst.msk [vmem:[#allocation4] sm:$0x1] %vm444, %v465
    %470 = vst.msk [vmem:[#allocation4 + $0x1] sm:$0x1] %vm444, %v466
    %471 = vst.msk [vmem:[#allocation4 + $0x2] sm:$0x1] %vm444, %v467
    %472 = vst.msk [vmem:[#allocation4 + $0x3] sm:$0x1] %vm444, %v468
    // Predicated region
    $region10: #{tpu_custom_call.1} parent=1 // pred_check
      _
    $region11: #{tpu_custom_call.1} parent=1 // pred_check_branch
      %474 = sbr.rel (0) target = $region13
    $region12: #{tpu_custom_call.1} parent=1 // pred_region
      %476 = vsyncadd [#allocation3], 0
      %s477 = sshll.u32 [#allocation2], 4
      %s478 = int_to_ptr.vmem [resolvable:$true] %s477
      %s479 = sshll.u32 %s1, 4
      %s480 = int_to_ptr.hbm [resolvable:$true] %s479
      %485 = dma.vmem_to_hbm [thread:$0]  %s478, 64, %s480, [#allocation3], 16, 16, 1
    $region13: #{tpu_custom_call.1} parent=1 // pred_fallthru
      _
    // Predicated region
    $region14: #{tpu_custom_call.1} parent=1 // pred_check
      _
    $region15: #{tpu_custom_call.1} parent=1 // pred_check_branch
      %487 = sbr.rel (0) target = $region17
    $region16: #{tpu_custom_call.1} parent=1 // pred_region
      %489 = vsyncadd [#allocation5], 0
      %s490 = sshll.u32 [#allocation4], 4
      %s491 = int_to_ptr.vmem [resolvable:$true] %s490
      %s492 = sshll.u32 %s2, 4
      %s493 = int_to_ptr.hbm [resolvable:$true] %s492
      %498 = dma.vmem_to_hbm [thread:$0]  %s491, 64, %s493, [#allocation5], 16, 16, 1
    $region17: #{tpu_custom_call.1} parent=1 // pred_fallthru
      _
    // Predicated region
    $region18: #{tpu_custom_call.1} parent=1 // pred_check
      _
    $region19: #{tpu_custom_call.1} parent=1 // pred_check_branch
      %500 = sbr.rel (0) target = $region21
    $region20: #{tpu_custom_call.1} parent=1 // pred_region
      %502 = dma.done [#allocation3], 64
    $region21: #{tpu_custom_call.1} parent=1 // pred_fallthru
      _
    // Predicated region
    $region22: #{tpu_custom_call.1} parent=1 // pred_check
      _
    $region23: #{tpu_custom_call.1} parent=1 // pred_check_branch
      %504 = sbr.rel (0) target = $region25
    $region24: #{tpu_custom_call.1} parent=1 // pred_region
      %506 = dma.done [#allocation5], 64
    $region25: #{tpu_custom_call.1} parent=1 // pred_fallthru
      _
    %507 = vsyncpa [#allocation3], 1
    %508 = vsyncpa [#allocation5], 1

</llo_original>
